<compile_context>
chip_gen: v5e
topology: v5e:2x2
jax: 0.10.0
libtpu: 0.0.40
codegen_flags: <defaults>
</compile_context>

<pallas_src>
import math

import jax
import jax.numpy as jnp
from jax.experimental import pallas as pl
from jax.experimental.pallas import tpu as pltpu

LN_EPS = 1e-12
_INV_SQRT2 = 1.0 / math.sqrt(2.0)


def _round_up(x, m):
    return ((x + m - 1) // m) * m


def _lm_head_kernel(x_ref, w1_ref, b1_ref, g_ref, beta_ref, w2_ref, b2_ref,
                    o_ref, h_ref):
    # Grid = (row tiles, vocab tiles). The transform (dense + GELU + LayerNorm)
    # depends only on the row tile, so compute it once per row tile (j == 0)
    # into the f32 VMEM scratch and reuse it for every vocab tile.
    @pl.when(pl.program_id(1) == 0)
    def _():
        h = jnp.dot(x_ref[...], w1_ref[...],
                    preferred_element_type=jnp.float32)
        h = h + b1_ref[...].astype(jnp.float32)
        # exact (erf-based) GELU, matching torch.nn.GELU default
        h = 0.5 * h * (1.0 + jax.lax.erf(h * _INV_SQRT2))
        # LayerNorm over the hidden axis (biased variance, eps=1e-12)
        mean = jnp.mean(h, axis=-1, keepdims=True)
        centered = h - mean
        var = jnp.mean(centered * centered, axis=-1, keepdims=True)
        h = centered * jax.lax.rsqrt(var + LN_EPS)
        h_ref[...] = (h * g_ref[...].astype(jnp.float32)
                      + beta_ref[...].astype(jnp.float32))

    # decoder on the current vocab tile: (tm, H) @ (H, tn) + (1, tn)
    y = jnp.dot(h_ref[...].astype(w2_ref.dtype), w2_ref[...],
                preferred_element_type=jnp.float32)
    o_ref[...] = (y + b2_ref[...].astype(jnp.float32)).astype(o_ref.dtype)


def bert_lm_prediction_head(hidden_states, params, *, tm=256, tn=1024,
                            compute_dtype=jnp.bfloat16):
    """hidden_states: [B, S, H] -> logits [B, S, num_classes]."""
    B, S, H = hidden_states.shape
    C = params["w_dec"].shape[1]
    M = B * S

    # Clamp tiles for small problems, then pad rows / vocab up to whole tiles.
    tm = min(tm, _round_up(M, 8))       # sublane multiple
    tn = min(tn, _round_up(C, 128))     # lane-dense output tile
    M_pad = _round_up(M, tm)
    C_pad = _round_up(C, tn)

    out_dtype = hidden_states.dtype
    mm_dtype = compute_dtype if compute_dtype is not None else hidden_states.dtype

    # Matmul operands in bf16 (cast once here, not per grid step inside the
    # kernel); biases / LN params stay f32 for the f32 elementwise path.
    x2d = hidden_states.reshape(M, H).astype(mm_dtype)
    if M_pad != M:
        x2d = jnp.pad(x2d, ((0, M_pad - M), (0, 0)))

    w_dense = params["w_dense"].astype(mm_dtype)
    b_dense = params["b_dense"].astype(jnp.float32)
    ln_gamma = params["ln_gamma"].astype(jnp.float32)
    ln_beta = params["ln_beta"].astype(jnp.float32)
    w_dec = params["w_dec"].astype(mm_dtype)
    b_dec = params["b_dec"].astype(jnp.float32)
    if C_pad != C:
        w_dec = jnp.pad(w_dec, ((0, 0), (0, C_pad - C)))
        b_dec = jnp.pad(b_dec, ((0, 0), (0, C_pad - C)))

    grid = (M_pad // tm, C_pad // tn)

    mm_bytes = jnp.dtype(mm_dtype).itemsize
    cost = pl.CostEstimate(
        flops=int(2 * M_pad * H * (H + C_pad)),
        transcendentals=int(M_pad * H),
        bytes_accessed=int(x2d.size * mm_bytes
                           + w_dense.size * mm_bytes
                           + w_dec.size * mm_bytes
                           + M_pad * C_pad * jnp.dtype(out_dtype).itemsize),
    )

    out = pl.pallas_call(
        _lm_head_kernel,
        out_shape=jax.ShapeDtypeStruct((M_pad, C_pad), out_dtype),
        grid_spec=pltpu.PrefetchScalarGridSpec(
            num_scalar_prefetch=0,
            grid=grid,
            in_specs=[
                pl.BlockSpec((tm, H), lambda i, j: (i, 0)),   # x row tile
                pl.BlockSpec((H, H), lambda i, j: (0, 0)),    # dense weight (in, out)
                pl.BlockSpec((1, H), lambda i, j: (0, 0)),    # dense bias
                pl.BlockSpec((1, H), lambda i, j: (0, 0)),    # LayerNorm gamma
                pl.BlockSpec((1, H), lambda i, j: (0, 0)),    # LayerNorm beta
                pl.BlockSpec((H, tn), lambda i, j: (0, j)),   # decoder weight tile
                pl.BlockSpec((1, tn), lambda i, j: (0, j)),   # decoder bias tile
            ],
            out_specs=pl.BlockSpec((tm, tn), lambda i, j: (i, j)),
            scratch_shapes=[pltpu.VMEM((tm, H), jnp.float32)],  # LN(GELU(dense)) cache
        ),
        compiler_params=pltpu.CompilerParams(
            dimension_semantics=("parallel", "arbitrary"),
            vmem_limit_bytes=48 * 1024 * 1024,  # fits v7x's 64 MiB physical VMEM
        ),
        cost_estimate=cost,
    )(x2d, w_dense, b_dense, ln_gamma, ln_beta, w_dec, b_dec)

    return out[:M, :C].reshape(B, S, C)


def init_params(key, hidden_size, num_classes, dtype=jnp.float32):
    k1, k2, k3, k4 = jax.random.split(key, 4)
    scale_h = 1.0 / math.sqrt(hidden_size)
    return {
        # weights stored as (in, out) == transpose of torch's (out, in)
        "w_dense": (jax.random.normal(k1, (hidden_size, hidden_size)) * scale_h).astype(dtype),
        "b_dense": (jax.random.normal(k2, (1, hidden_size)) * 0.02).astype(dtype),
        "ln_gamma": jnp.ones((1, hidden_size), dtype),
        "ln_beta": jnp.zeros((1, hidden_size), dtype),
        "w_dec": (jax.random.normal(k3, (hidden_size, num_classes)) * scale_h).astype(dtype),
        "b_dec": (jax.random.normal(k4, (1, num_classes)) * 0.02).astype(dtype),
    }


def _reference(hidden_states, params):
    """Pure-JAX f32 reference matching the PyTorch module."""
    B, S, H = hidden_states.shape
    C = params["w_dec"].shape[1]
    x = hidden_states.astype(jnp.float32).reshape(-1, H)
    h = x @ params["w_dense"].astype(jnp.float32) + params["b_dense"].astype(jnp.float32)
    h = 0.5 * h * (1.0 + jax.lax.erf(h * _INV_SQRT2))
    mean = h.mean(-1, keepdims=True)
    var = ((h - mean) ** 2).mean(-1, keepdims=True)
    h = (h - mean) * jax.lax.rsqrt(var + LN_EPS)
    h = h * params["ln_gamma"].astype(jnp.float32) + params["ln_beta"].astype(jnp.float32)
    y = h @ params["w_dec"].astype(jnp.float32) + params["b_dec"].astype(jnp.float32)
    return y.reshape(B, S, C)


if __name__ == "__main__":
    batch, seq, hidden, num_classes = 2, 8, 32, 64

    key = jax.random.PRNGKey(0)
    k_x, k_p = jax.random.split(key)
    x = jax.random.normal(k_x, (batch, seq, hidden), jnp.float32)
    params = init_params(k_p, hidden, num_classes)

    out = bert_lm_prediction_head(x, params)
    out = jax.block_until_ready(out)
    assert out.shape == (batch, seq, num_classes)

    # bf16 matmul operands + f32 accumulation -> loose tolerance vs f32 reference
    ref = _reference(x, params)
    err = jnp.max(jnp.abs(out.astype(jnp.float32) - ref))
    assert err < 5e-2, f"max abs error too large: {err}"

    print("KERNEL_OK")
</pallas_src>

<mosaic_0001>
module attributes {stable_mosaic.version = 11 : i64} {
  func.func @_lm_head_kernel(%arg0: i32, %arg1: i32, %arg2: memref<16x32xbf16, #tpu.memory_space<vmem>>, %arg3: memref<32x32xbf16, #tpu.memory_space<vmem>>, %arg4: memref<1x32xf32, #tpu.memory_space<vmem>>, %arg5: memref<1x32xf32, #tpu.memory_space<vmem>>, %arg6: memref<1x32xf32, #tpu.memory_space<vmem>>, %arg7: memref<32x128xbf16, #tpu.memory_space<vmem>>, %arg8: memref<1x128xf32, #tpu.memory_space<vmem>>, %arg9: memref<16x128xf32, #tpu.memory_space<vmem>>, %arg10: memref<16x32xf32, #tpu.memory_space<vmem>>) attributes {dimension_semantics = [#tpu.dimension_semantics<parallel>, #tpu.dimension_semantics<arbitrary>], iteration_bounds = array<i64: 1, 1>, scalar_prefetch = 0 : i64, scratch_operands = 1 : i64, tpu.core_type = #tpu.core_type<tc>, window_params = [{transform_indices = @transform_0, window_bounds = array<i64: 16, 32>}, {pipeline_mode = #tpu.pipeline_mode<synchronous>, transform_indices = @transform_1, window_bounds = array<i64: 32, 32>}, {pipeline_mode = #tpu.pipeline_mode<synchronous>, transform_indices = @transform_2, window_bounds = array<i64: 1, 32>}, {pipeline_mode = #tpu.pipeline_mode<synchronous>, transform_indices = @transform_3, window_bounds = array<i64: 1, 32>}, {pipeline_mode = #tpu.pipeline_mode<synchronous>, transform_indices = @transform_4, window_bounds = array<i64: 1, 32>}, {transform_indices = @transform_5, window_bounds = array<i64: 32, 128>}, {transform_indices = @transform_6, window_bounds = array<i64: 1, 128>}, {transform_indices = @transform_7, window_bounds = array<i64: 16, 128>}]} {
    %c0_i32 = arith.constant 0 : i32
    %0 = arith.cmpi eq, %arg1, %c0_i32 : i32
    %1 = arith.extui %0 : i1 to i32
    %c0_i32_0 = arith.constant 0 : i32
    %2 = arith.cmpi ne, %1, %c0_i32_0 : i32
    scf.if %2 {
      %c0_8 = arith.constant 0 : index
      %c0_9 = arith.constant 0 : index
      %11 = vector.load %arg2[%c0_8, %c0_9] : memref<16x32xbf16, #tpu.memory_space<vmem>>, vector<16x32xbf16>
      %c0_10 = arith.constant 0 : index
      %c0_11 = arith.constant 0 : index
      %12 = vector.load %arg3[%c0_10, %c0_11] : memref<32x32xbf16, #tpu.memory_space<vmem>>, vector<32x32xbf16>
      %cst_12 = arith.constant dense<0.000000e+00> : vector<16x32xf32>
      %13 = tpu.matmul %11, %12, %cst_12 {dimension_numbers = #tpu.dot_dimension_numbers<[1], [0], [0], [1], [0, 0, 1, 1], [], []>} : vector<16x32xbf16>, vector<32x32xbf16>, vector<16x32xf32> -> vector<16x32xf32>
      %c0_13 = arith.constant 0 : index
      %c0_14 = arith.constant 0 : index
      %14 = vector.load %arg4[%c0_13, %c0_14] : memref<1x32xf32, #tpu.memory_space<vmem>>, vector<1x32xf32>
      %15 = vector.broadcast %14 : vector<1x32xf32> to vector<16x32xf32>
      %16 = arith.addf %13, %15 : vector<16x32xf32>
      %cst_15 = arith.constant 5.000000e-01 : f32
      %17 = vector.broadcast %cst_15 : f32 to vector<16x32xf32>
      %18 = arith.mulf %17, %16 : vector<16x32xf32>
      %cst_16 = arith.constant 0.707106769 : f32
      %19 = vector.broadcast %cst_16 : f32 to vector<16x32xf32>
      %20 = arith.mulf %16, %19 : vector<16x32xf32>
      %21 = math.erf %20 : vector<16x32xf32>
      %cst_17 = arith.constant 1.000000e+00 : f32
      %22 = vector.broadcast %cst_17 : f32 to vector<16x32xf32>
      %23 = arith.addf %22, %21 : vector<16x32xf32>
      %24 = arith.mulf %18, %23 : vector<16x32xf32>
      %cst_18 = arith.constant dense<0.000000e+00> : vector<16xf32>
      %25 = vector.multi_reduction <add>, %24, %cst_18 [1] : vector<16x32xf32> to vector<16xf32>
      %26 = vector.shape_cast %25 : vector<16xf32> to vector<16x1xf32>
      %cst_19 = arith.constant 3.200000e+01 : f32
      %27 = vector.broadcast %cst_19 : f32 to vector<16x1xf32>
      %28 = arith.divf %26, %27 : vector<16x1xf32>
      %29 = vector.broadcast %28 : vector<16x1xf32> to vector<16x32xf32>
      %30 = arith.subf %24, %29 : vector<16x32xf32>
      %31 = arith.mulf %30, %30 : vector<16x32xf32>
      %cst_20 = arith.constant dense<0.000000e+00> : vector<16xf32>
      %32 = vector.multi_reduction <add>, %31, %cst_20 [1] : vector<16x32xf32> to vector<16xf32>
      %33 = vector.shape_cast %32 : vector<16xf32> to vector<16x1xf32>
      %cst_21 = arith.constant 3.200000e+01 : f32
      %34 = vector.broadcast %cst_21 : f32 to vector<16x1xf32>
      %35 = arith.divf %33, %34 : vector<16x1xf32>
      %cst_22 = arith.constant 9.99999996E-13 : f32
      %36 = vector.broadcast %cst_22 : f32 to vector<16x1xf32>
      %37 = arith.addf %35, %36 : vector<16x1xf32>
      %38 = math.rsqrt %37 : vector<16x1xf32>
      %39 = vector.broadcast %38 : vector<16x1xf32> to vector<16x32xf32>
      %40 = arith.mulf %30, %39 : vector<16x32xf32>
      %c0_23 = arith.constant 0 : index
      %c0_24 = arith.constant 0 : index
      %41 = vector.load %arg5[%c0_23, %c0_24] : memref<1x32xf32, #tpu.memory_space<vmem>>, vector<1x32xf32>
      %42 = vector.broadcast %41 : vector<1x32xf32> to vector<16x32xf32>
      %43 = arith.mulf %40, %42 : vector<16x32xf32>
      %c0_25 = arith.constant 0 : index
      %c0_26 = arith.constant 0 : index
      %44 = vector.load %arg6[%c0_25, %c0_26] : memref<1x32xf32, #tpu.memory_space<vmem>>, vector<1x32xf32>
      %45 = vector.broadcast %44 : vector<1x32xf32> to vector<16x32xf32>
      %46 = arith.addf %43, %45 : vector<16x32xf32>
      %c0_27 = arith.constant 0 : index
      %c0_28 = arith.constant 0 : index
      %47 = vector.load %arg10[%c0_27, %c0_28] : memref<16x32xf32, #tpu.memory_space<vmem>>, vector<16x32xf32>
      tpu.vector_store %arg10[%c0_27, %c0_28], %46 {strides = array<i32>} : memref<16x32xf32, #tpu.memory_space<vmem>>, vector<16x32xf32>,
    } else {
    }
    %c0 = arith.constant 0 : index
    %c0_1 = arith.constant 0 : index
    %3 = vector.load %arg10[%c0, %c0_1] : memref<16x32xf32, #tpu.memory_space<vmem>>, vector<16x32xf32>
    %4 = arith.truncf %3 : vector<16x32xf32> to vector<16x32xbf16>
    %c0_2 = arith.constant 0 : index
    %c0_3 = arith.constant 0 : index
    %5 = vector.load %arg7[%c0_2, %c0_3] : memref<32x128xbf16, #tpu.memory_space<vmem>>, vector<32x128xbf16>
    %cst = arith.constant dense<0.000000e+00> : vector<16x128xf32>
    %6 = tpu.matmul %4, %5, %cst {dimension_numbers = #tpu.dot_dimension_numbers<[1], [0], [0], [1], [0, 0, 1, 1], [], []>} : vector<16x32xbf16>, vector<32x128xbf16>, vector<16x128xf32> -> vector<16x128xf32>
    %c0_4 = arith.constant 0 : index
    %c0_5 = arith.constant 0 : index
    %7 = vector.load %arg8[%c0_4, %c0_5] : memref<1x128xf32, #tpu.memory_space<vmem>>, vector<1x128xf32>
    %8 = vector.broadcast %7 : vector<1x128xf32> to vector<16x128xf32>
    %9 = arith.addf %6, %8 : vector<16x128xf32>
    %c0_6 = arith.constant 0 : index
    %c0_7 = arith.constant 0 : index
    %10 = vector.load %arg9[%c0_6, %c0_7] : memref<16x128xf32, #tpu.memory_space<vmem>>, vector<16x128xf32>
    tpu.vector_store %arg9[%c0_6, %c0_7], %9 {strides = array<i32>} : memref<16x128xf32, #tpu.memory_space<vmem>>, vector<16x128xf32>,
    return
  }
  func.func @transform_0(%arg0: i32, %arg1: i32) -> (i32, i32) {
    %c0_i32 = arith.constant 0 : i32
    %c0_i32_0 = arith.constant 0 : i32
    return %arg0, %c0_i32 : i32, i32
  }
  func.func @transform_1(%arg0: i32, %arg1: i32) -> (i32, i32) {
    %c0_i32 = arith.constant 0 : i32
    %c0_i32_0 = arith.constant 0 : i32
    %c0_i32_1 = arith.constant 0 : i32
    return %c0_i32, %c0_i32_0 : i32, i32
  }
  func.func @transform_2(%arg0: i32, %arg1: i32) -> (i32, i32) {
    %c0_i32 = arith.constant 0 : i32
    %c0_i32_0 = arith.constant 0 : i32
    %c0_i32_1 = arith.constant 0 : i32
    return %c0_i32, %c0_i32_0 : i32, i32
  }
  func.func @transform_3(%arg0: i32, %arg1: i32) -> (i32, i32) {
    %c0_i32 = arith.constant 0 : i32
    %c0_i32_0 = arith.constant 0 : i32
    %c0_i32_1 = arith.constant 0 : i32
    return %c0_i32, %c0_i32_0 : i32, i32
  }
  func.func @transform_4(%arg0: i32, %arg1: i32) -> (i32, i32) {
    %c0_i32 = arith.constant 0 : i32
    %c0_i32_0 = arith.constant 0 : i32
    %c0_i32_1 = arith.constant 0 : i32
    return %c0_i32, %c0_i32_0 : i32, i32
  }
  func.func @transform_5(%arg0: i32, %arg1: i32) -> (i32, i32) {
    %c0_i32 = arith.constant 0 : i32
    %c0_i32_0 = arith.constant 0 : i32
    return %c0_i32, %arg1 : i32, i32
  }
  func.func @transform_6(%arg0: i32, %arg1: i32) -> (i32, i32) {
    %c0_i32 = arith.constant 0 : i32
    %c0_i32_0 = arith.constant 0 : i32
    return %c0_i32, %arg1 : i32, i32
  }
  func.func @transform_7(%arg0: i32, %arg1: i32) -> (i32, i32) {
    %c0_i32 = arith.constant 0 : i32
    return %arg0, %arg1 : i32, i32
  }
}

</mosaic_0001>

<llo_original>
// kernel: tpu_custom_call.1
$region0: #{tpu_custom_call.1}
  #allocation0 [shape = 'u32[]', space=smem, size = 0x4, offset = 0x4, fixed_abs, tag = 'smem constant byte address 0x4 - core index']
  #allocation1 [shape = 'u32[72,128]{1,0:T(1,128)}', space=vmem, size = 0x9000, scoped, tag = 'internal scratch']
  #allocation2 [shape = 'f32[16,32]{1,0:T(8,128)}', space=vmem, size = 0x2000, scoped, tag = 'scratch operand']
  %s0 = inlined_call_operand.hbm [shape: bf16[16,32], index: 0, kind: input, shape index: {}]
  %s1 = inlined_call_operand.hbm [shape: bf16[32,32], index: 1, kind: input, shape index: {}]
  %s2 = inlined_call_operand.vmem [shape: f32[1,32], index: 2, kind: input, shape index: {}]
  %s3 = inlined_call_operand.vmem [shape: f32[1,32], index: 3, kind: input, shape index: {}]
  %s4 = inlined_call_operand.vmem [shape: f32[1,32], index: 4, kind: input, shape index: {}]
  %s5 = inlined_call_operand.hbm [shape: bf16[32,128], index: 5, kind: input, shape index: {}]
  %s6 = inlined_call_operand.vmem [shape: f32[1,128], index: 6, kind: input, shape index: {}]
  %s7 = inlined_call_operand.hbm [shape: f32[16,128], index: 7, kind: output, shape index: {}]
  %s8 = sld [smem:[#allocation0]]
  $region54: #{tpu_custom_call.1} parent=0
    _
  %s10 = ssub.s32 1, %s8
  %s11 = scalar_select 0, %s10, %s8
  $region1: #{tpu_custom_call.1} parent=0
    #allocation3 [shape = 'u8[4096]{0}', space=vmem, size = 0x1000, scoped, tag = 'input window, operand 0, single buffered']
    #allocation4 [shape = 's32[1]{0}', space=sflag, size = 0x4, scoped, tag = 'scoped memory for tpu_custom_call.1']
    #allocation5 [shape = 's32[1]{0}', space=sflag, size = 0x4, scoped, tag = 'scoped memory for tpu_custom_call.1']
    #allocation6 [shape = 'u8[8192]{0}', space=vmem, size = 0x2000, scoped, tag = 'input window, operand 1, single buffered']
    #allocation7 [shape = 's32[1]{0}', space=sflag, size = 0x4, scoped, tag = 'scoped memory for tpu_custom_call.1']
    #allocation8 [shape = 'u8[8192]{0}', space=vmem, size = 0x2000, scoped, tag = 'input window, operand 5, single buffered']
    #allocation9 [shape = 'u8[8192]{0}', space=vmem, size = 0x2000, scoped, tag = 'output window, operand 0, single buffered']
    %12 = vsyncpa [#allocation4], 0
    %13 = vsyncpa [#allocation7], 0
    %14 = vsyncpa [#allocation5], 0
    // Predicated region
    $region2: #{tpu_custom_call.1} parent=1 // pred_check
      _
    $region3: #{tpu_custom_call.1} parent=1 // pred_check_branch
      %16 = sbr.rel (0) target = $region5
    $region4: #{tpu_custom_call.1} parent=1 // pred_region
      %18 = vsyncadd [#allocation4], 0
      %s19 = sshll.u32 %s0, 4
      %s20 = int_to_ptr.hbm [resolvable:$true] %s19
      %s21 = sshll.u32 [#allocation3], 4
      %s22 = int_to_ptr.vmem [resolvable:$true] %s21
      %27 = dma.hbm_to_vmem [thread:$0]  %s20, 128, %s22, [#allocation4], 64, 64, 4
    $region5: #{tpu_custom_call.1} parent=1 // pred_fallthru
      _
    // Predicated region
    $region6: #{tpu_custom_call.1} parent=1 // pred_check
      _
    $region7: #{tpu_custom_call.1} parent=1 // pred_check_branch
      %29 = sbr.rel (0) target = $region9
    $region8: #{tpu_custom_call.1} parent=1 // pred_region
      %31 = vsyncadd [#allocation7], 0
      %s32 = sshll.u32 %s1, 4
      %s33 = int_to_ptr.hbm [resolvable:$true] %s32
      %s34 = sshll.u32 [#allocation6], 4
      %s35 = int_to_ptr.vmem [resolvable:$true] %s34
      %40 = dma.hbm_to_vmem [thread:$0]  %s33, 256, %s35, [#allocation7], 64, 64, 4
    $region9: #{tpu_custom_call.1} parent=1 // pred_fallthru
      _
    // Predicated region
    $region10: #{tpu_custom_call.1} parent=1 // pred_check
      _
    $region11: #{tpu_custom_call.1} parent=1 // pred_check_branch
      %42 = sbr.rel (0) target = $region13
    $region12: #{tpu_custom_call.1} parent=1 // pred_region
      _
    $region13: #{tpu_custom_call.1} parent=1 // pred_fallthru
      _
    // Predicated region
    $region14: #{tpu_custom_call.1} parent=1 // pred_check
      _
    $region15: #{tpu_custom_call.1} parent=1 // pred_check_branch
      %44 = sbr.rel (0) target = $region17
    $region16: #{tpu_custom_call.1} parent=1 // pred_region
      _
    $region17: #{tpu_custom_call.1} parent=1 // pred_fallthru
      _
    // Predicated region
    $region18: #{tpu_custom_call.1} parent=1 // pred_check
      _
    $region19: #{tpu_custom_call.1} parent=1 // pred_check_branch
      %46 = sbr.rel (0) target = $region21
    $region20: #{tpu_custom_call.1} parent=1 // pred_region
      _
    $region21: #{tpu_custom_call.1} parent=1 // pred_fallthru
      _
    // Predicated region
    $region22: #{tpu_custom_call.1} parent=1 // pred_check
      _
    $region23: #{tpu_custom_call.1} parent=1 // pred_check_branch
      %48 = sbr.rel (0) target = $region25
    $region24: #{tpu_custom_call.1} parent=1 // pred_region
      %50 = vsyncadd [#allocation7], 0
      %s51 = sshll.u32 %s5, 4
      %s52 = int_to_ptr.hbm [resolvable:$true] %s51
      %s53 = sshll.u32 [#allocation8], 4
      %s54 = int_to_ptr.vmem [resolvable:$true] %s53
      %59 = dma.hbm_to_vmem [thread:$0]  %s52, 256, %s54, [#allocation7], 64, 64, 4
    $region25: #{tpu_custom_call.1} parent=1 // pred_fallthru
      _
    // Predicated region
    $region26: #{tpu_custom_call.1} parent=1 // pred_check
      _
    $region27: #{tpu_custom_call.1} parent=1 // pred_check_branch
      %61 = sbr.rel (0) target = $region29
    $region28: #{tpu_custom_call.1} parent=1 // pred_region
      _
    $region29: #{tpu_custom_call.1} parent=1 // pred_fallthru
      _
    // Predicated region
    $region30: #{tpu_custom_call.1} parent=1 // pred_check
      _
    $region31: #{tpu_custom_call.1} parent=1 // pred_check_branch
      %63 = sbr.rel (0) target = $region33
    $region32: #{tpu_custom_call.1} parent=1 // pred_region
      %65 = dma.done [#allocation4], 128
    $region33: #{tpu_custom_call.1} parent=1 // pred_fallthru
      _
    // Predicated region
    $region34: #{tpu_custom_call.1} parent=1 // pred_check
      _
    $region35: #{tpu_custom_call.1} parent=1 // pred_check_branch
      %67 = sbr.rel (0) target = $region37
    $region36: #{tpu_custom_call.1} parent=1 // pred_region
      %69 = dma.done [#allocation7], 256
    $region37: #{tpu_custom_call.1} parent=1 // pred_fallthru
      _
    // Predicated region
    $region38: #{tpu_custom_call.1} parent=1 // pred_check
      _
    $region39: #{tpu_custom_call.1} parent=1 // pred_check_branch
      %71 = sbr.rel (0) target = $region41
    $region40: #{tpu_custom_call.1} parent=1 // pred_region
      %73 = dma.done [#allocation7], 256
    $region41: #{tpu_custom_call.1} parent=1 // pred_fallthru
      _
    %p75 = scmp.eq.s32.totalorder 0, 0
    // Predicated region
    $region42: #{tpu_custom_call.1} parent=1 // pred_check
      %p76 = pneg %p75
    $region43: #{tpu_custom_call.1} parent=1 // pred_check_branch
      %78 = sbr.rel (%p76) target = $region45
    $region44: #{tpu_custom_call.1} parent=1 // pred_region
      %v79 = vld [vmem:[#allocation3] sm:$0xf]
      %v80 = vld [vmem:[#allocation3 + $0x4] sm:$0xf]
      %v81 = vld [vmem:[#allocation6] sm:$0xf]
      %v82 = vld [vmem:[#allocation6 + $0x4] sm:$0xf]
      %v83 = vld [vmem:[#allocation6 + $0x8] sm:$0xf]
      %v84 = vld [vmem:[#allocation6 + $0xc] sm:$0xf]
      %v85 = vld [vmem:[%s2] sm:$0x1]
      %v87 = vperm.slane %v85, 0
      %v91 = vunpack.c.l.b16 %v79
      %v92 = vunpack.c.l.b16 %v80
      %v93 = vpack.c.b16 %v92, %v91
      %v98 = vunpack.c.l.b16 %v81
      %v99 = vunpack.c.l.b16 %v82
      %v100 = vunpack.c.l.b16 %v83
      %v101 = vunpack.c.l.b16 %v84
      %v102 = vpack.c.b16 %v99, %v98
      %v103 = vpack.c.b16 %v101, %v100
      %vm106 = vcmask 261120
      %v108 = vsel %vm106, %v93, 0
      %110 = vmatpush.bf16.msra.mxu0 0
      %111 = vmatpush.bf16.msra.mxu0 0
      %112 = vmatpush.bf16.msra.mxu0 0
      %113 = vmatpush.bf16.msra.mxu0 0
      %114 = vmatpush.bf16.msra.mxu0 0
      %115 = vmatpush.bf16.msra.mxu0 0
      %116 = vmatpush.bf16.msra.mxu0 %v103
      %117 = vmatpush.bf16.msra.mxu0 %v102
      %118 = vmatmul.bf16.gmra.mxu0 %v108
      %v119 = vpop.f32.mrf.mxu0
      %v120 = vadd.f32 %v87, %v119
      %v121 = vpop.f32.mrf.mxu0
      %v122 = vadd.f32 %v87, %v121
      %123 = vdwg.mxu0
      %v124 = vmul.f32 %v120, 0.5
      %v125 = vmul.f32 %v122, 0.5
      %v126 = vmul.f32 %v120, 0.70710677
      %v127 = vmul.f32 %v122, 0.70710677
      %v128 = vmul.f32 %v126, %v126
      %v129 = vmin.f32 16.0, %v128
      %v130 = vmul.f32 %v129, 2.1237322e-06
      %v131 = vadd.f32 %v130, 0.00028619796
      %v132 = vmul.f32 %v129, %v131
      %v133 = vadd.f32 %v132, 0.0036580483
      %v134 = vmul.f32 %v129, %v133
      %v135 = vadd.f32 %v134, 0.05243302
      %v136 = vmul.f32 %v129, %v135
      %v137 = vadd.f32 %v136, 0.18741608
      %v138 = vmul.f32 %v129, %v137
      %v139 = vadd.f32 %v138, 1.1283791
      %v140 = vmul.f32 %v126, %v139
      %v141 = vmul.f32 %v129, 3.8918573e-05
      %v142 = vadd.f32 %v141, 0.001143296
      %v143 = vmul.f32 %v129, %v142
      %v144 = vadd.f32 %v143, 0.014752088
      %v145 = vmul.f32 %v129, %v144
      %v146 = vadd.f32 %v145, 0.112945676
      %v147 = vmul.f32 %v129, %v146
      %v148 = vadd.f32 %v147, 0.4994258
      %v149 = vmul.f32 %v129, %v148
      %v150 = vadd.f32 %v149, 1.0
      %v151 = vrcp.pop %v150
      %v152 = vmul.f32 %v150, %v151
      %v153 = vsub.f32 1.0, %v152
      %v154 = vmul.f32 %v151, %v153
      %v155 = vadd.f32 %v151, %v154
      %vm156 = vweird.f32 %v150
      %vm157 = vweird.f32 %v151
      %vm158 = vmor %vm156, %vm157
      %v159 = vsel %vm158, %v151, %v155
      %v160 = vand.u32 2147483647, %v150
      %vm161 = vcmp.eq.f32.partialorder %v160, 8.507059e+37
      %v162 = vand.u32 %v150, 2147483648
      %v163 = vor.u32 1.1754944e-38, %v162
      %v164 = vsel %vm161, %v163, %v159
      %v165 = vmul.f32 %v140, %v164
      %v166 = vmin.f32 %v165, 1.0
      %v167 = vmax.f32 %v166, -1.0
      %v168 = vmul.f32 %v127, %v127
      %v169 = vmin.f32 16.0, %v168
      %v170 = vmul.f32 %v169, 2.1237322e-06
      %v171 = vadd.f32 %v170, 0.00028619796
      %v172 = vmul.f32 %v169, %v171
      %v173 = vadd.f32 %v172, 0.0036580483
      %v174 = vmul.f32 %v169, %v173
      %v175 = vadd.f32 %v174, 0.05243302
      %v176 = vmul.f32 %v169, %v175
      %v177 = vadd.f32 %v176, 0.18741608
      %v178 = vmul.f32 %v169, %v177
      %v179 = vadd.f32 %v178, 1.1283791
      %v180 = vmul.f32 %v127, %v179
      %v181 = vmul.f32 %v169, 3.8918573e-05
      %v182 = vadd.f32 %v181, 0.001143296
      %v183 = vmul.f32 %v169, %v182
      %v184 = vadd.f32 %v183, 0.014752088
      %v185 = vmul.f32 %v169, %v184
      %v186 = vadd.f32 %v185, 0.112945676
      %v187 = vmul.f32 %v169, %v186
      %v188 = vadd.f32 %v187, 0.4994258
      %v189 = vmul.f32 %v169, %v188
      %v190 = vadd.f32 %v189, 1.0
      %v191 = vrcp.pop %v190
      %v192 = vmul.f32 %v190, %v191
      %v193 = vsub.f32 1.0, %v192
      %v194 = vmul.f32 %v191, %v193
      %v195 = vadd.f32 %v191, %v194
      %vm196 = vweird.f32 %v190
      %vm197 = vweird.f32 %v191
      %vm198 = vmor %vm196, %vm197
      %v199 = vsel %vm198, %v191, %v195
      %v200 = vand.u32 2147483647, %v190
      %vm201 = vcmp.eq.f32.partialorder %v200, 8.507059e+37
      %v202 = vand.u32 %v190, 2147483648
      %v203 = vor.u32 1.1754944e-38, %v202
      %v204 = vsel %vm201, %v203, %v199
      %v205 = vmul.f32 %v180, %v204
      %v206 = vmin.f32 %v205, 1.0
      %v207 = vmax.f32 %v206, -1.0
      %v208 = vadd.f32 %v167, 1.0
      %v209 = vadd.f32 %v207, 1.0
      %v210 = vmul.f32 %v124, %v208
      %v211 = vmul.f32 %v125, %v209
      %v212 = vsel %vm106, %v210, 0.0
      %213 = vadd.xlane.f32.xlu0 %v212
      %v214 = vpop.xlane.xlu0 %213
      %v215 = vsel %vm106, %v211, 0.0
      %216 = vadd.xlane.f32.xlu0 %v215
      %v217 = vpop.xlane.xlu0 %216
      %v218 = vrcp.pop 32.0
      %v219 = vmul.f32 32.0, %v218
      %v220 = vsub.f32 1.0, %v219
      %v221 = vmul.f32 %v218, %v220
      %v222 = vadd.f32 %v218, %v221
      %vm223 = vweird.f32 %v218
      %v224 = vsel %vm223, %v218, %v222
      %v225 = vmul.f32 %v214, %v224
      %v226 = vmul.f32 %v217, %v224
      %v227 = vsub.f32 %v210, %v225
      %v228 = vsub.f32 %v211, %v226
      %v229 = vmul.f32 %v227, %v227
      %v230 = vmul.f32 %v228, %v228
      %v231 = vsel %vm106, %v229, 0.0
      %232 = vadd.xlane.f32.xlu0 %v231
      %v233 = vpop.xlane.xlu0 %232
      %v234 = vsel %vm106, %v230, 0.0
      %235 = vadd.xlane.f32.xlu0 %v234
      %v236 = vpop.xlane.xlu0 %235
      %v237 = vmul.f32 %v233, %v224
      %v238 = vmul.f32 %v236, %v224
      %v239 = vadd.f32 %v237, 1e-12
      %v240 = vadd.f32 %v238, 1e-12
      %v241 = vrsqrt.pop %v239
      %v242 = vmul.f32 %v241, %v239
      %v243 = vmul.f32 %v242, %v241
      %v244 = vmul.f32 0.5, %v243
      %v245 = vsub.f32 1.5, %v244
      %v246 = vmul.f32 %v241, %v245
      %vm247 = vweird.f32 %v239
      %vm248 = vweird.f32 %v241
      %vm249 = vmor %vm247, %vm248
      %v250 = vsel %vm249, %v241, %v246
      %v251 = vrsqrt.pop %v240
      %v252 = vmul.f32 %v251, %v240
      %v253 = vmul.f32 %v252, %v251
      %v254 = vmul.f32 0.5, %v253
      %v255 = vsub.f32 1.5, %v254
      %v256 = vmul.f32 %v251, %v255
      %vm257 = vweird.f32 %v240
      %vm258 = vweird.f32 %v251
      %vm259 = vmor %vm257, %vm258
      %v260 = vsel %vm259, %v251, %v256
      %v261 = vmul.f32 %v227, %v250
      %v262 = vmul.f32 %v228, %v260
      %v263 = vld [vmem:[%s3] sm:$0x1]
      %v265 = vperm.slane %v263, 0
      %v267 = vmul.f32 %v261, %v265
      %v268 = vmul.f32 %v262, %v265
      %v269 = vld [vmem:[%s4] sm:$0x1]
      %v271 = vperm.slane %v269, 0
      %v273 = vadd.f32 %v267, %v271
      %v274 = vadd.f32 %v268, %v271
      %275 = vst.msk [vmem:[#allocation2] sm:$0xff] %vm106, %v273
      %276 = vst.msk [vmem:[#allocation2 + $0x8] sm:$0xff] %vm106, %v274
    $region45: #{tpu_custom_call.1} parent=1 // pred_fallthru
      _
    %v277 = vld [vmem:[#allocation2] sm:$0xff]
    %v278 = vld [vmem:[#allocation2 + $0x8] sm:$0xff]
    %v279 = vpack.c.bf16 %v278, %v277
    %v280 = vld [vmem:[#allocation8] sm:$0xf]
    %v281 = vld [vmem:[#allocation8 + $0x4] sm:$0xf]
    %v282 = vld [vmem:[#allocation8 + $0x8] sm:$0xf]
    %v283 = vld [vmem:[#allocation8 + $0xc] sm:$0xf]
    %v284 = vld [vmem:[%s6] sm:$0x1]
    %v286 = vperm.slane %v284, 0
    %v292 = vunpack.c.l.b16 %v280
    %v293 = vunpack.c.l.b16 %v281
    %v294 = vunpack.c.l.b16 %v282
    %v295 = vunpack.c.l.b16 %v283
    %v296 = vpack.c.b16 %v293, %v292
    %v297 = vpack.c.b16 %v295, %v294
    %vm300 = vcmask 261120
    %v302 = vsel %vm300, %v279, 0
    %304 = vmatpush.bf16.msra.mxu0 0
    %305 = vmatpush.bf16.msra.mxu0 0
    %306 = vmatpush.bf16.msra.mxu0 0
    %307 = vmatpush.bf16.msra.mxu0 0
    %308 = vmatpush.bf16.msra.mxu0 0
    %309 = vmatpush.bf16.msra.mxu0 0
    %310 = vmatpush.bf16.msra.mxu0 %v297
    %311 = vmatpush.bf16.msra.mxu0 %v296
    %312 = vmatmul.bf16.gmra.mxu0 %v302
    %v313 = vpop.f32.mrf.mxu0
    %v314 = vadd.f32 %v286, %v313
    %v315 = vpop.f32.mrf.mxu0
    %v316 = vadd.f32 %v286, %v315
    %317 = vdwg.mxu0
    %318 = vst [vmem:[#allocation9] sm:$0xff] %v314
    %319 = vst [vmem:[#allocation9 + $0x8] sm:$0xff] %v316
    // Predicated region
    $region46: #{tpu_custom_call.1} parent=1 // pred_check
      _
    $region47: #{tpu_custom_call.1} parent=1 // pred_check_branch
      %321 = sbr.rel (0) target = $region49
    $region48: #{tpu_custom_call.1} parent=1 // pred_region
      %323 = vsyncadd [#allocation5], 0
      %s324 = sshll.u32 [#allocation9], 4
      %s325 = int_to_ptr.vmem [resolvable:$true] %s324
      %s326 = sshll.u32 %s7, 4
      %s327 = int_to_ptr.hbm [resolvable:$true] %s326
      %332 = dma.vmem_to_hbm [thread:$0]  %s325, 256, %s327, [#allocation5], 128, 128, 8
    $region49: #{tpu_custom_call.1} parent=1 // pred_fallthru
      _
    // Predicated region
    $region50: #{tpu_custom_call.1} parent=1 // pred_check
      _
    $region51: #{tpu_custom_call.1} parent=1 // pred_check_branch
      %334 = sbr.rel (0) target = $region53
    $region52: #{tpu_custom_call.1} parent=1 // pred_region
      %336 = dma.done [#allocation5], 256
    $region53: #{tpu_custom_call.1} parent=1 // pred_fallthru
      _
    %337 = vsyncpa [#allocation4], 1
    %338 = vsyncpa [#allocation7], 1
    %339 = vsyncpa [#allocation5], 1

</llo_original>
